<compile_context>
chip_gen: v7x
topology: tpu7x:2x2x1
jax: 0.10.0
libtpu: 0.0.40
codegen_flags: <defaults>
</compile_context>

<pallas_src>
import functools
from math import prod

import jax
import jax.numpy as jnp
from jax.experimental import pallas as pl
from jax.experimental.pallas import tpu as pltpu


def _round_up(x, m):
    return ((x + m - 1) // m) * m


def _cdiv(a, b):
    return -(-a // b)


def _vmem_capacity_bytes():
    # Per-generation VMEM: v5e/v6e 128 MiB, v7x 64 MiB per TensorCore.
    try:
        return int(pltpu.get_tpu_info().vmem_capacity_bytes)
    except Exception:
        return 64 << 20  # conservative fallback: v7x per-TC capacity


def prepare_params(w_loc, b_loc, w_scale, b_scale, *, param_dtype=jnp.float32):
    """Fuse the two heads into one weight matrix, once, outside the per-call path.

    Each head's F columns are zero-padded to F_pad = round_up(F, 128) so output
    stores are lane-dense and the scale half is lane-aligned.  Returns
    (w_fused (in_dim, 2*F_pad) in param_dtype, b_fused (1, 2*F_pad) f32, F).
    """
    in_dim, F = w_loc.shape
    F_pad = _round_up(F, 128)
    w = jnp.zeros((in_dim, 2 * F_pad), param_dtype)
    w = w.at[:, :F].set(w_loc.astype(param_dtype))
    w = w.at[:, F_pad:F_pad + F].set(w_scale.astype(param_dtype))
    b = jnp.zeros((1, 2 * F_pad), jnp.float32)
    b = b.at[0, :F].set(b_loc.astype(jnp.float32))
    b = b.at[0, F_pad:F_pad + F].set(b_scale.astype(jnp.float32))
    return w, b, F


def _locscale_kernel(F_pad, x_ref, w_ref, b_ref, loc_ref, scale_ref):
    # x_ref: (bb, in_dim)   w_ref: (in_dim, 2*F_pad)   b_ref: (1, 2*F_pad)
    # loc_ref / scale_ref: (bb, F_pad)
    x = x_ref[...]
    if x.dtype != w_ref.dtype:
        x = x.astype(w_ref.dtype)  # bf16 MXU operands on v6e/v7x when requested
    # One wide weight-stationary MXU matmul for both heads; f32 accumulation.
    y = jnp.dot(x, w_ref[...], preferred_element_type=jnp.float32) + b_ref[...]
    loc = y[:, :F_pad]          # lane-aligned static slices (F_pad % 128 == 0)
    s = y[:, F_pad:]
    # One-exp, branch-free softplus (== PyTorch Softplus(beta=1, threshold=20) in f32),
    # applied to the scale half only.
    sp = jnp.maximum(s, 0.0) + jnp.log1p(jnp.exp(-jnp.abs(s)))
    loc_ref[...] = loc.astype(loc_ref.dtype)
    scale_ref[...] = sp.astype(scale_ref.dtype)


@functools.partial(
    jax.jit, static_argnames=("F", "out_size", "block_b", "single_buffer_weights"))
def loc_scale_forward(x, w_fused, b_fused, *, F, out_size, block_b=512,
                      single_buffer_weights=True):
    """x: (B, in_dim); w_fused/b_fused from prepare_params(); returns (loc, scale)."""
    B, in_dim = x.shape
    F2p = w_fused.shape[1]
    F_pad = F2p // 2
    assert F_pad == _round_up(F, 128) and prod(out_size) == F

    out_dtype = x.dtype                     # epilogue/output stay in the caller dtype
    if x.dtype != w_fused.dtype:
        x = x.astype(w_fused.dtype)         # match MXU operand dtype (e.g. bf16)

    # ---- batch tile selection -------------------------------------------------
    def tile_bytes(bb):
        w_bufs = 1 if single_buffer_weights else 2
        return (2 * bb * in_dim * x.dtype.itemsize                      # x tile (2 bufs)
                + w_bufs * in_dim * F2p * w_fused.dtype.itemsize        # fused W
                + w_bufs * F2p * 4                                      # fused bias (f32)
                + 2 * 2 * bb * F_pad * jnp.dtype(out_dtype).itemsize    # 2 outs (2 bufs)
                + bb * F2p * 4)                                         # f32 matmul result

    vmem_budget = max(_vmem_capacity_bytes() - (8 << 20), 16 << 20)

    if B <= block_b:
        bb = B                              # full-extent batch block (any B allowed)
    else:
        bb = _round_up(block_b, 8)          # interior blocks must be sublane-aligned
    # Keep >=2 grid steps so both v7x TensorCores get work (near-neutral on 1-TC chips).
    while _cdiv(B, bb) < 2 and bb > 8:
        bb = _round_up(bb // 2, 8)
    # Shrink until the tile footprint fits the per-generation VMEM budget.
    while tile_bytes(bb) > vmem_budget and bb > 8:
        bb = _round_up(bb // 2, 8)

    grid = (_cdiv(B, bb),)
    vmem_limit = int(min(max(tile_bytes(bb) + (4 << 20), 16 << 20), vmem_budget))

    cost = pl.CostEstimate(
        flops=2 * B * in_dim * F2p + 4 * B * F_pad,
        transcendentals=2 * B * F_pad,      # exp + log1p on the scale half only
        bytes_accessed=(B * in_dim * x.dtype.itemsize
                        + in_dim * F2p * w_fused.dtype.itemsize
                        + F2p * 4
                        + 2 * B * F_pad * jnp.dtype(out_dtype).itemsize),
    )

    # Grid-invariant weights/bias: request single buffering (halves their VMEM).
    wb_kwargs = {"pipeline_mode": pl.Buffered(1)} if single_buffer_weights else {}
    in_specs = [
        pl.BlockSpec((bb, in_dim), lambda i: (i, 0)),                  # x tile
        pl.BlockSpec((in_dim, F2p), lambda i: (0, 0), **wb_kwargs),    # fused W
        pl.BlockSpec((1, F2p), lambda i: (0, 0), **wb_kwargs),         # fused bias
    ]
    out_specs = [
        pl.BlockSpec((bb, F_pad), lambda i: (i, 0)),                   # loc (lane-dense)
        pl.BlockSpec((bb, F_pad), lambda i: (i, 0)),                   # scale (lane-dense)
    ]

    loc_p, scale_p = pl.pallas_call(
        functools.partial(_locscale_kernel, F_pad),
        out_shape=(jax.ShapeDtypeStruct((B, F_pad), out_dtype),
                   jax.ShapeDtypeStruct((B, F_pad), out_dtype)),
        grid_spec=pltpu.PrefetchScalarGridSpec(
            num_scalar_prefetch=0,
            grid=grid,
            in_specs=in_specs,
            out_specs=out_specs,
        ),
        compiler_params=pltpu.CompilerParams(
            dimension_semantics=("parallel",),
            vmem_limit_bytes=vmem_limit,
        ),
        cost_estimate=cost,
    )(x, w_fused, b_fused)

    # Drop the lane padding and apply the View (reshape) — plain-JAX layout glue.
    loc = loc_p[:, :F].reshape((B,) + tuple(out_size))
    scale = scale_p[:, :F].reshape((B,) + tuple(out_size))
    return loc, scale


def _init_linear(key, in_dim, out_dim):
    # torch.nn.Linear default init: U(-k, k), k = 1/sqrt(in_dim), weight and bias.
    k = 1.0 / jnp.sqrt(jnp.float32(in_dim))
    kw, kb = jax.random.split(key)
    w = jax.random.uniform(kw, (in_dim, out_dim), jnp.float32, -k, k)
    b = jax.random.uniform(kb, (out_dim,), jnp.float32, -k, k)
    return w, b


if __name__ == "__main__":
    key = jax.random.PRNGKey(0)
    k_x, k_l, k_s, k_x2 = jax.random.split(key, 4)

    B, in_dim = 8, 32
    out_size = (4, 8)                       # prod(out_size) = 32 features per head
    F = prod(out_size)

    x = jax.random.normal(k_x, (B, in_dim), jnp.float32)
    w_loc, b_loc = _init_linear(k_l, in_dim, F)
    w_scale, b_scale = _init_linear(k_s, in_dim, F)

    # Fuse + lane-pad the parameters once (not on every forward call).
    w_f, b_f, F = prepare_params(w_loc, b_loc, w_scale, b_scale)

    ref_loc = (x @ w_loc + b_loc).reshape((B,) + out_size)
    ref_scale = jax.nn.softplus(x @ w_scale + b_scale).reshape((B,) + out_size)

    def run_and_check(single_buffer):
        loc, scale = loc_scale_forward(x, w_f, b_f, F=F, out_size=out_size,
                                       single_buffer_weights=single_buffer)
        jax.block_until_ready((loc, scale))
        assert loc.shape == (B,) + out_size and scale.shape == (B,) + out_size
        assert jnp.allclose(loc, ref_loc, atol=1e-5)
        assert jnp.allclose(scale, ref_scale, atol=1e-5)
        assert bool(jnp.all(scale > 0))
        return single_buffer

    try:
        # Preferred path: pl.Buffered(1) on the grid-invariant W/b (v7x VMEM headroom).
        single_buf = run_and_check(True)
    except Exception:
        # Fallback for JAX builds that reject single buffering via pipeline_mode.
        single_buf = run_and_check(False)

    # Ragged batch: no wrapper-side jnp.pad; the trailing partial block is clipped.
    B2 = 5
    x2 = jax.random.normal(k_x2, (B2, in_dim), jnp.float32)
    loc2, scale2 = loc_scale_forward(x2, w_f, b_f, F=F, out_size=out_size,
                                     single_buffer_weights=single_buf)
    jax.block_until_ready((loc2, scale2))
    assert jnp.allclose(loc2, (x2 @ w_loc + b_loc).reshape((B2,) + out_size), atol=1e-5)
    assert jnp.allclose(
        scale2,
        jax.nn.softplus(x2 @ w_scale + b_scale).reshape((B2,) + out_size),
        atol=1e-5)

    # bf16 MXU-operand path (v6e/v7x feedback): bf16 params/activations into the MXU,
    # f32 accumulation + f32 softplus epilogue; looser tolerance for bf16 rounding.
    w_f16, b_f16, _ = prepare_params(w_loc, b_loc, w_scale, b_scale,
                                     param_dtype=jnp.bfloat16)
    loc3, scale3 = loc_scale_forward(x, w_f16, b_f16, F=F, out_size=out_size,
                                     single_buffer_weights=single_buf)
    jax.block_until_ready((loc3, scale3))
    assert jnp.allclose(loc3, ref_loc, atol=5e-2, rtol=5e-2)
    assert jnp.allclose(scale3, ref_scale, atol=5e-2, rtol=5e-2)

    print("KERNEL_OK")
</pallas_src>

<mosaic_0001>
module attributes {stable_mosaic.version = 11 : i64} {
  func.func @_locscale_kernel(%arg0: i32, %arg1: memref<8x32xf32, #tpu.memory_space<vmem>>, %arg2: memref<32x256xf32, #tpu.memory_space<vmem>>, %arg3: memref<1x256xf32, #tpu.memory_space<vmem>>, %arg4: memref<8x128xf32, #tpu.memory_space<vmem>>, %arg5: memref<8x128xf32, #tpu.memory_space<vmem>>) attributes {dimension_semantics = [#tpu.dimension_semantics<parallel>], iteration_bounds = array<i64: 1>, scalar_prefetch = 0 : i64, scratch_operands = 0 : i64, tpu.core_type = #tpu.core_type<tc>, window_params = [{transform_indices = @transform_0, window_bounds = array<i64: 8, 32>}, {pipeline_mode = #tpu.pipeline_mode<synchronous>, transform_indices = @transform_1, window_bounds = array<i64: 32, 256>}, {pipeline_mode = #tpu.pipeline_mode<synchronous>, transform_indices = @transform_2, window_bounds = array<i64: 1, 256>}, {transform_indices = @transform_3, window_bounds = array<i64: 8, 128>}, {transform_indices = @transform_4, window_bounds = array<i64: 8, 128>}]} {
    %c0 = arith.constant 0 : index
    %c0_0 = arith.constant 0 : index
    %0 = vector.load %arg1[%c0, %c0_0] : memref<8x32xf32, #tpu.memory_space<vmem>>, vector<8x32xf32>
    %c0_1 = arith.constant 0 : index
    %c0_2 = arith.constant 0 : index
    %1 = vector.load %arg2[%c0_1, %c0_2] : memref<32x256xf32, #tpu.memory_space<vmem>>, vector<32x256xf32>
    %cst = arith.constant dense<0.000000e+00> : vector<8x256xf32>
    %2 = tpu.matmul %0, %1, %cst {dimension_numbers = #tpu.dot_dimension_numbers<[1], [0], [0], [1], [0, 0, 1, 1], [], []>} : vector<8x32xf32>, vector<32x256xf32>, vector<8x256xf32> -> vector<8x256xf32>
    %c0_3 = arith.constant 0 : index
    %c0_4 = arith.constant 0 : index
    %3 = vector.load %arg3[%c0_3, %c0_4] : memref<1x256xf32, #tpu.memory_space<vmem>>, vector<1x256xf32>
    %4 = vector.broadcast %3 : vector<1x256xf32> to vector<8x256xf32>
    %5 = arith.addf %2, %4 : vector<8x256xf32>
    %6 = vector.extract_strided_slice %5 {offsets = [0, 0], sizes = [8, 128], strides = [1, 1]} : vector<8x256xf32> to vector<8x128xf32>
    %7 = vector.extract_strided_slice %5 {offsets = [0, 128], sizes = [8, 128], strides = [1, 1]} : vector<8x256xf32> to vector<8x128xf32>
    %cst_5 = arith.constant 0.000000e+00 : f32
    %8 = vector.broadcast %cst_5 : f32 to vector<8x128xf32>
    %9 = arith.maximumf %7, %8 : vector<8x128xf32>
    %10 = math.absf %7 : vector<8x128xf32>
    %cst_6 = arith.constant 0.000000e+00 : f32
    %11 = vector.broadcast %cst_6 : f32 to vector<8x128xf32>
    %12 = arith.subf %11, %10 : vector<8x128xf32>
    %13 = math.exp %12 : vector<8x128xf32>
    %14 = math.log1p %13 : vector<8x128xf32>
    %15 = arith.addf %9, %14 : vector<8x128xf32>
    %c0_7 = arith.constant 0 : index
    %c0_8 = arith.constant 0 : index
    %16 = vector.load %arg4[%c0_7, %c0_8] : memref<8x128xf32, #tpu.memory_space<vmem>>, vector<8x128xf32>
    tpu.vector_store %arg4[%c0_7, %c0_8], %6 {strides = array<i32>} : memref<8x128xf32, #tpu.memory_space<vmem>>, vector<8x128xf32>,
    %c0_9 = arith.constant 0 : index
    %c0_10 = arith.constant 0 : index
    %17 = vector.load %arg5[%c0_9, %c0_10] : memref<8x128xf32, #tpu.memory_space<vmem>>, vector<8x128xf32>
    tpu.vector_store %arg5[%c0_9, %c0_10], %15 {strides = array<i32>} : memref<8x128xf32, #tpu.memory_space<vmem>>, vector<8x128xf32>,
    return
  }
  func.func @transform_0(%arg0: i32) -> (i32, i32) {
    %c0_i32 = arith.constant 0 : i32
    %c0_i32_0 = arith.constant 0 : i32
    return %arg0, %c0_i32 : i32, i32
  }
  func.func @transform_1(%arg0: i32) -> (i32, i32) {
    %c0_i32 = arith.constant 0 : i32
    %c0_i32_0 = arith.constant 0 : i32
    %c0_i32_1 = arith.constant 0 : i32
    return %c0_i32, %c0_i32_0 : i32, i32
  }
  func.func @transform_2(%arg0: i32) -> (i32, i32) {
    %c0_i32 = arith.constant 0 : i32
    %c0_i32_0 = arith.constant 0 : i32
    %c0_i32_1 = arith.constant 0 : i32
    return %c0_i32, %c0_i32_0 : i32, i32
  }
  func.func @transform_3(%arg0: i32) -> (i32, i32) {
    %c0_i32 = arith.constant 0 : i32
    %c0_i32_0 = arith.constant 0 : i32
    return %arg0, %c0_i32 : i32, i32
  }
  func.func @transform_4(%arg0: i32) -> (i32, i32) {
    %c0_i32 = arith.constant 0 : i32
    %c0_i32_0 = arith.constant 0 : i32
    return %arg0, %c0_i32 : i32, i32
  }
}

module attributes {stable_mosaic.version = 11 : i64} {
  func.func @_locscale_kernel(%arg0: i32, %arg1: memref<8x32xf32, #tpu.memory_space<vmem>>, %arg2: memref<32x256xf32, #tpu.memory_space<vmem>>, %arg3: memref<1x256xf32, #tpu.memory_space<vmem>>, %arg4: memref<8x128xf32, #tpu.memory_space<vmem>>, %arg5: memref<8x128xf32, #tpu.memory_space<vmem>>) attributes {dimension_semantics = [#tpu.dimension_semantics<parallel>], iteration_bounds = array<i64: 1>, scalar_prefetch = 0 : i64, scratch_operands = 0 : i64, tpu.core_type = #tpu.core_type<tc>, window_params = [{transform_indices = @transform_0, window_bounds = array<i64: 8, 32>}, {pipeline_mode = #tpu.pipeline_mode<synchronous>, transform_indices = @transform_1, window_bounds = array<i64: 32, 256>}, {pipeline_mode = #tpu.pipeline_mode<synchronous>, transform_indices = @transform_2, window_bounds = array<i64: 1, 256>}, {transform_indices = @transform_3, window_bounds = array<i64: 8, 128>}, {transform_indices = @transform_4, window_bounds = array<i64: 8, 128>}]} {
    %c0 = arith.constant 0 : index
    %c0_0 = arith.constant 0 : index
    %0 = vector.load %arg1[%c0, %c0_0] : memref<8x32xf32, #tpu.memory_space<vmem>>, vector<8x32xf32>
    %c0_1 = arith.constant 0 : index
    %c0_2 = arith.constant 0 : index
    %1 = vector.load %arg2[%c0_1, %c0_2] : memref<32x256xf32, #tpu.memory_space<vmem>>, vector<32x256xf32>
    %cst = arith.constant dense<0.000000e+00> : vector<8x256xf32>
    %2 = tpu.matmul %0, %1, %cst {dimension_numbers = #tpu.dot_dimension_numbers<[1], [0], [0], [1], [0, 0, 1, 1], [], []>} : vector<8x32xf32>, vector<32x256xf32>, vector<8x256xf32> -> vector<8x256xf32>
    %c0_3 = arith.constant 0 : index
    %c0_4 = arith.constant 0 : index
    %3 = vector.load %arg3[%c0_3, %c0_4] : memref<1x256xf32, #tpu.memory_space<vmem>>, vector<1x256xf32>
    %4 = vector.broadcast %3 : vector<1x256xf32> to vector<8x256xf32>
    %5 = arith.addf %2, %4 : vector<8x256xf32>
    %6 = vector.extract_strided_slice %5 {offsets = [0, 0], sizes = [8, 128], strides = [1, 1]} : vector<8x256xf32> to vector<8x128xf32>
    %7 = vector.extract_strided_slice %5 {offsets = [0, 128], sizes = [8, 128], strides = [1, 1]} : vector<8x256xf32> to vector<8x128xf32>
    %cst_5 = arith.constant 0.000000e+00 : f32
    %8 = vector.broadcast %cst_5 : f32 to vector<8x128xf32>
    %9 = arith.maximumf %7, %8 : vector<8x128xf32>
    %10 = math.absf %7 : vector<8x128xf32>
    %cst_6 = arith.constant 0.000000e+00 : f32
    %11 = vector.broadcast %cst_6 : f32 to vector<8x128xf32>
    %12 = arith.subf %11, %10 : vector<8x128xf32>
    %13 = math.exp %12 : vector<8x128xf32>
    %14 = math.log1p %13 : vector<8x128xf32>
    %15 = arith.addf %9, %14 : vector<8x128xf32>
    %c0_7 = arith.constant 0 : index
    %c0_8 = arith.constant 0 : index
    %16 = vector.load %arg4[%c0_7, %c0_8] : memref<8x128xf32, #tpu.memory_space<vmem>>, vector<8x128xf32>
    tpu.vector_store %arg4[%c0_7, %c0_8], %6 {strides = array<i32>} : memref<8x128xf32, #tpu.memory_space<vmem>>, vector<8x128xf32>,
    %c0_9 = arith.constant 0 : index
    %c0_10 = arith.constant 0 : index
    %17 = vector.load %arg5[%c0_9, %c0_10] : memref<8x128xf32, #tpu.memory_space<vmem>>, vector<8x128xf32>
    tpu.vector_store %arg5[%c0_9, %c0_10], %15 {strides = array<i32>} : memref<8x128xf32, #tpu.memory_space<vmem>>, vector<8x128xf32>,
    return
  }
  func.func @transform_0(%arg0: i32) -> (i32, i32) {
    %c0_i32 = arith.constant 0 : i32
    %c0_i32_0 = arith.constant 0 : i32
    return %arg0, %c0_i32 : i32, i32
  }
  func.func @transform_1(%arg0: i32) -> (i32, i32) {
    %c0_i32 = arith.constant 0 : i32
    %c0_i32_0 = arith.constant 0 : i32
    %c0_i32_1 = arith.constant 0 : i32
    return %c0_i32, %c0_i32_0 : i32, i32
  }
  func.func @transform_2(%arg0: i32) -> (i32, i32) {
    %c0_i32 = arith.constant 0 : i32
    %c0_i32_0 = arith.constant 0 : i32
    %c0_i32_1 = arith.constant 0 : i32
    return %c0_i32, %c0_i32_0 : i32, i32
  }
  func.func @transform_3(%arg0: i32) -> (i32, i32) {
    %c0_i32 = arith.constant 0 : i32
    %c0_i32_0 = arith.constant 0 : i32
    return %arg0, %c0_i32 : i32, i32
  }
  func.func @transform_4(%arg0: i32) -> (i32, i32) {
    %c0_i32 = arith.constant 0 : i32
    %c0_i32_0 = arith.constant 0 : i32
    return %arg0, %c0_i32 : i32, i32
  }
}

</mosaic_0001>

<llo_original>
// kernel: loc_scale_forward.1
$region0: #{loc_scale_forward.1}
  #allocation0 [shape = 'u32[]', space=smem, size = 0x4, offset = 0x4, fixed_abs, tag = 'smem constant byte address 0x4 - core index']
  #allocation1 [shape = 'u32[144,128]{1,0:T(1,128)}', space=vmem, size = 0x12000, scoped, tag = 'internal scratch']
  %s0 = inlined_call_operand.hbm [shape: f32[8,32], index: 0, kind: input, shape index: {}]
  %s1 = inlined_call_operand.hbm [shape: f32[32,256], index: 1, kind: input, shape index: {}]
  %s2 = inlined_call_operand.vmem [shape: f32[1,256], index: 2, kind: input, shape index: {}]
  %s3 = inlined_call_operand.vmem [shape: f32[8,128], index: 3, kind: output, shape index: {0}]
  %s4 = inlined_call_operand.vmem [shape: f32[8,128], index: 4, kind: output, shape index: {1}]
  %5 = xla_tuple %s3, %s4
  %s6 = sld [smem:[#allocation0]]
  $region38: #{loc_scale_forward.1} parent=0
    _
  %s8 = ssub.s32 1, %s6
  %s9 = scalar_select 0, %s8, %s6
  $region1: #{loc_scale_forward.1} parent=0
    #allocation2 [shape = 'u8[4096]{0}', space=vmem, size = 0x1000, scoped, tag = 'input window, operand 0, single buffered']
    #allocation3 [shape = 's32[1]{0}', space=sflag, size = 0x4, scoped, tag = 'scoped memory for loc_scale_forward.1']
    #allocation4 [shape = 'u8[32768]{0}', space=vmem, size = 0x8000, scoped, tag = 'input window, operand 1, single buffered']
    #allocation5 [shape = 's32[1]{0}', space=sflag, size = 0x4, scoped, tag = 'scoped memory for loc_scale_forward.1']
    %10 = vsyncpa [#allocation3], 0
    %11 = vsyncpa [#allocation5], 0
    // Predicated region
    $region2: #{loc_scale_forward.1} parent=1 // pred_check
      _
    $region3: #{loc_scale_forward.1} parent=1 // pred_check_branch
      %13 = sbr.rel (0) target = $region5
    $region4: #{loc_scale_forward.1} parent=1 // pred_region
      %s15 = ssub.s32 128, 128
      %16 = vsyncadd [#allocation3], %s15
      %s18 = sshll.u32 [#allocation2], 4
      %s19 = int_to_ptr.vmem [resolvable:$true] %s18
      %21 = dma.hbm_to_vmem [thread:$0]  %s0, 128, %s19, [#allocation3]
    $region5: #{loc_scale_forward.1} parent=1 // pred_fallthru
      _
    // Predicated region
    $region6: #{loc_scale_forward.1} parent=1 // pred_check
      _
    $region7: #{loc_scale_forward.1} parent=1 // pred_check_branch
      %23 = sbr.rel (0) target = $region9
    $region8: #{loc_scale_forward.1} parent=1 // pred_region
      %s25 = ssub.s32 1024, 1024
      %26 = vsyncadd [#allocation5], %s25
      %s27 = sshll.u32 [#allocation4], 4
      %s28 = int_to_ptr.vmem [resolvable:$true] %s27
      %33 = dma.hbm_to_vmem [thread:$0]  %s1, 1024, %s28, [#allocation5], 256, 256, 16
    $region9: #{loc_scale_forward.1} parent=1 // pred_fallthru
      _
    // Predicated region
    $region10: #{loc_scale_forward.1} parent=1 // pred_check
      _
    $region11: #{loc_scale_forward.1} parent=1 // pred_check_branch
      %35 = sbr.rel (0) target = $region13
    $region12: #{loc_scale_forward.1} parent=1 // pred_region
      _
    $region13: #{loc_scale_forward.1} parent=1 // pred_fallthru
      _
    // Predicated region
    $region14: #{loc_scale_forward.1} parent=1 // pred_check
      _
    $region15: #{loc_scale_forward.1} parent=1 // pred_check_branch
      %37 = sbr.rel (0) target = $region17
    $region16: #{loc_scale_forward.1} parent=1 // pred_region
      %38 = dma.done [#allocation3], 128
    $region17: #{loc_scale_forward.1} parent=1 // pred_fallthru
      _
    // Predicated region
    $region18: #{loc_scale_forward.1} parent=1 // pred_check
      _
    $region19: #{loc_scale_forward.1} parent=1 // pred_check_branch
      %40 = sbr.rel (0) target = $region21
    $region20: #{loc_scale_forward.1} parent=1 // pred_region
      %41 = dma.done [#allocation5], 1024
    $region21: #{loc_scale_forward.1} parent=1 // pred_fallthru
      _
    %v42 = vld [vmem:[#allocation2] sm:$0xff]
    %v43 = vld [vmem:[#allocation4] sm:$0xff]
    %v44 = vld [vmem:[#allocation4 + $0x8] sm:$0xff]
    %v45 = vld [vmem:[#allocation4 + $0x10] sm:$0xff]
    %v46 = vld [vmem:[#allocation4 + $0x18] sm:$0xff]
    %v47 = vld [vmem:[#allocation4 + $0x20] sm:$0xff]
    %v48 = vld [vmem:[#allocation4 + $0x28] sm:$0xff]
    %v49 = vld [vmem:[#allocation4 + $0x30] sm:$0xff]
    %v50 = vld [vmem:[#allocation4 + $0x38] sm:$0xff]
    %v51 = vld [vmem:[%s2] sm:$0x3]
    %v53 = vlaneseq
    %v54 = vshrl.u32 %v53, 7
    %v55 = vsub.s32 0, %v54
    %v56 = vrot.slane %v51, %v55
    %v57 = vlaneseq
    %v58 = vshrl.u32 %v57, 7
    %v59 = vsub.s32 1, %v58
    %v60 = vrot.slane %v51, %v59
    %vm63 = vcmask 261120
    %v65 = vsel %vm63, %v42, 0
    %67 = vmatprep.subr.mxu0 %v44
    %68 = vmatpush1.msra.mxu0 %v43
    %69 = vmatprep.subr.mxu0 %v46
    %70 = vmatpush1.msra.mxu0 %v45
    %71 = vmatprep.subr.mxu0 %v48
    %72 = vmatpush1.msra.mxu0 %v47
    %73 = vmatprep.subr.mxu0 %v50
    %74 = vmatpush1.msra.mxu0 %v49
    %75 = vmatprep.subr.mxu0 0.0
    %76 = vmatpush1.msra.mxu0 0.0
    %77 = vmatprep.subr.mxu0 0.0
    %78 = vmatpush1.msra.mxu0 0.0
    %79 = vmatprep.subr.mxu0 0.0
    %80 = vmatpush1.msra.mxu0 0.0
    %81 = vmatprep.subr.mxu0 0.0
    %82 = vmatpush1.msra.mxu0 0.0
    %83 = vmatprep.subr.mxu0 0.0
    %84 = vmatpush1.msra.mxu0 0.0
    %85 = vmatprep.subr.mxu0 0.0
    %86 = vmatpush1.msra.mxu0 0.0
    %87 = vmatprep.subr.mxu0 0.0
    %88 = vmatpush1.msra.mxu0 0.0
    %89 = vmatprep.subr.mxu0 0.0
    %90 = vmatpush1.msra.mxu0 0.0
    %91 = vmatprep.subr.mxu0 0.0
    %92 = vmatpush1.msra.mxu0 0.0
    %93 = vmatprep.subr.mxu0 0.0
    %94 = vmatpush1.msra.mxu0 0.0
    %95 = vmatprep.subr.mxu0 0.0
    %96 = vmatpush1.msra.mxu0 0.0
    %97 = vmatprep.subr.mxu0 0.0
    %98 = vmatpush1.msra.mxu0 0.0
    %99 = vmatprep.subr.mxu0 0.0
    %100 = vmatpush1.msra.mxu0 0.0
    %101 = vmatprep.subr.mxu0 0.0
    %102 = vmatpush1.msra.mxu0 0.0
    %103 = vmatprep.subr.mxu0 0.0
    %104 = vmatpush1.msra.mxu0 0.0
    %105 = vmatprep.subr.mxu0 0.0
    %106 = vmatpush1.msra.mxu0 0.0
    %107 = vmatprep.subr.mxu0 0.0
    %108 = vmatpush1.msra.mxu0 0.0
    %109 = vmatprep.subr.mxu0 0.0
    %110 = vmatpush1.msra.mxu0 0.0
    %111 = vmatprep.subr.mxu0 0.0
    %112 = vmatpush1.msra.mxu0 0.0
    %113 = vmatprep.subr.mxu0 0.0
    %114 = vmatpush1.msra.mxu0 0.0
    %115 = vmatprep.subr.mxu0 0.0
    %116 = vmatpush1.msra.mxu0 0.0
    %117 = vmatprep.subr.mxu0 0.0
    %118 = vmatpush1.msra.mxu0 0.0
    %119 = vmatprep.subr.mxu0 0.0
    %120 = vmatpush1.msra.mxu0 0.0
    %121 = vmatprep.subr.mxu0 0.0
    %122 = vmatpush1.msra.mxu0 0.0
    %123 = vmatprep.subr.mxu0 0.0
    %124 = vmatpush1.msra.mxu0 0.0
    %125 = vmatprep.subr.mxu0 0.0
    %126 = vmatpush1.msra.mxu0 0.0
    %127 = vmatprep.subr.mxu0 0.0
    %128 = vmatpush1.msra.mxu0 0.0
    %129 = vmatprep.subr.mxu0 0.0
    %130 = vmatpush1.msra.mxu0 0.0
    %131 = vmatprep.mubr.f32.mxu0 0.0
    %132 = vmatmul.mubr.f32.gmra.mrb[0].mxu0 %v65
    %v133 = vpop.f32.mrb[0].mxu0
    %v134 = vadd.f32 %v56, %v133
    %v135 = vpop.f32.mrb[0].mxu0
    %v136 = vadd.f32 %v60, %v135
    %137 = vdwg.mxu0
    %v138 = vmax.f32 %v136, 0.0
    %v139 = vand.u32 2147483647, %v136
    %v140 = vsub.f32 0.0, %v139
    %v141 = vmul.f32 %v140, 1.442695
    %v142 = vpow.pop %v141
    %v143 = vadd.f32 %v142, 1.0
    %v144 = vlog2.pop %v143
    %v145 = vmul.f32 %v144, 0.6931472
    %v146 = vmul.f32 -0.5, %v142
    %v147 = vadd.f32 %v146, 1.0
    %v148 = vmul.f32 %v147, %v142
    %v149 = vand.u32 2147483647, %v142
    %vm150 = vcmp.lt.f32.partialorder %v149, 0.0004427343
    %v151 = vsel %vm150, %v148, %v145
    %v152 = vadd.f32 %v138, %v151
    %153 = vst [vmem:[%s3] sm:$0xff] %v134
    %154 = vst [vmem:[%s4] sm:$0xff] %v152
    // Predicated region
    $region22: #{loc_scale_forward.1} parent=1 // pred_check
      _
    $region23: #{loc_scale_forward.1} parent=1 // pred_check_branch
      %156 = sbr.rel (0) target = $region25
    $region24: #{loc_scale_forward.1} parent=1 // pred_region
      _
    $region25: #{loc_scale_forward.1} parent=1 // pred_fallthru
      _
    // Predicated region
    $region26: #{loc_scale_forward.1} parent=1 // pred_check
      _
    $region27: #{loc_scale_forward.1} parent=1 // pred_check_branch
      %158 = sbr.rel (0) target = $region29
    $region28: #{loc_scale_forward.1} parent=1 // pred_region
      _
    $region29: #{loc_scale_forward.1} parent=1 // pred_fallthru
      _
    // Predicated region
    $region30: #{loc_scale_forward.1} parent=1 // pred_check
      _
    $region31: #{loc_scale_forward.1} parent=1 // pred_check_branch
      %160 = sbr.rel (0) target = $region33
    $region32: #{loc_scale_forward.1} parent=1 // pred_region
      _
    $region33: #{loc_scale_forward.1} parent=1 // pred_fallthru
      _
    // Predicated region
    $region34: #{loc_scale_forward.1} parent=1 // pred_check
      _
    $region35: #{loc_scale_forward.1} parent=1 // pred_check_branch
      %162 = sbr.rel (0) target = $region37
    $region36: #{loc_scale_forward.1} parent=1 // pred_region
      _
    $region37: #{loc_scale_forward.1} parent=1 // pred_fallthru
      _
    %163 = vsyncpa [#allocation3], 1
    %164 = vsyncpa [#allocation5], 1

// kernel: loc_scale_forward.1
$region0: #{loc_scale_forward.1}
  #allocation0 [shape = 'u32[]', space=smem, size = 0x4, offset = 0x4, fixed_abs, tag = 'smem constant byte address 0x4 - core index']
  #allocation1 [shape = 'u32[144,128]{1,0:T(1,128)}', space=vmem, size = 0x12000, scoped, tag = 'internal scratch']
  %s0 = inlined_call_operand.hbm [shape: f32[8,32], index: 0, kind: input, shape index: {}]
  %s1 = inlined_call_operand.hbm [shape: f32[32,256], index: 1, kind: input, shape index: {}]
  %s2 = inlined_call_operand.vmem [shape: f32[1,256], index: 2, kind: input, shape index: {}]
  %s3 = inlined_call_operand.vmem [shape: f32[8,128], index: 3, kind: output, shape index: {0}]
  %s4 = inlined_call_operand.vmem [shape: f32[8,128], index: 4, kind: output, shape index: {1}]
  %5 = xla_tuple %s3, %s4
  %s6 = sld [smem:[#allocation0]]
  $region38: #{loc_scale_forward.1} parent=0
    _
  %s8 = ssub.s32 1, %s6
  %s9 = scalar_select 0, %s8, %s6
  $region1: #{loc_scale_forward.1} parent=0
    #allocation2 [shape = 'u8[4096]{0}', space=vmem, size = 0x1000, scoped, tag = 'input window, operand 0, single buffered']
    #allocation3 [shape = 's32[1]{0}', space=sflag, size = 0x4, scoped, tag = 'scoped memory for loc_scale_forward.1']
    #allocation4 [shape = 'u8[32768]{0}', space=vmem, size = 0x8000, scoped, tag = 'input window, operand 1, single buffered']
    #allocation5 [shape = 's32[1]{0}', space=sflag, size = 0x4, scoped, tag = 'scoped memory for loc_scale_forward.1']
    %10 = vsyncpa [#allocation3], 0
    %11 = vsyncpa [#allocation5], 0
    // Predicated region
    $region2: #{loc_scale_forward.1} parent=1 // pred_check
      _
    $region3: #{loc_scale_forward.1} parent=1 // pred_check_branch
      %13 = sbr.rel (0) target = $region5
    $region4: #{loc_scale_forward.1} parent=1 // pred_region
      %s15 = ssub.s32 128, 128
      %16 = vsyncadd [#allocation3], %s15
      %s18 = sshll.u32 [#allocation2], 4
      %s19 = int_to_ptr.vmem [resolvable:$true] %s18
      %21 = dma.hbm_to_vmem [thread:$0]  %s0, 128, %s19, [#allocation3]
    $region5: #{loc_scale_forward.1} parent=1 // pred_fallthru
      _
    // Predicated region
    $region6: #{loc_scale_forward.1} parent=1 // pred_check
      _
    $region7: #{loc_scale_forward.1} parent=1 // pred_check_branch
      %23 = sbr.rel (0) target = $region9
    $region8: #{loc_scale_forward.1} parent=1 // pred_region
      %s25 = ssub.s32 1024, 1024
      %26 = vsyncadd [#allocation5], %s25
      %s27 = sshll.u32 [#allocation4], 4
      %s28 = int_to_ptr.vmem [resolvable:$true] %s27
      %33 = dma.hbm_to_vmem [thread:$0]  %s1, 1024, %s28, [#allocation5], 256, 256, 16
    $region9: #{loc_scale_forward.1} parent=1 // pred_fallthru
      _
    // Predicated region
    $region10: #{loc_scale_forward.1} parent=1 // pred_check
      _
    $region11: #{loc_scale_forward.1} parent=1 // pred_check_branch
      %35 = sbr.rel (0) target = $region13
    $region12: #{loc_scale_forward.1} parent=1 // pred_region
      _
    $region13: #{loc_scale_forward.1} parent=1 // pred_fallthru
      _
    // Predicated region
    $region14: #{loc_scale_forward.1} parent=1 // pred_check
      _
    $region15: #{loc_scale_forward.1} parent=1 // pred_check_branch
      %37 = sbr.rel (0) target = $region17
    $region16: #{loc_scale_forward.1} parent=1 // pred_region
      %38 = dma.done [#allocation3], 128
    $region17: #{loc_scale_forward.1} parent=1 // pred_fallthru
      _
    // Predicated region
    $region18: #{loc_scale_forward.1} parent=1 // pred_check
      _
    $region19: #{loc_scale_forward.1} parent=1 // pred_check_branch
      %40 = sbr.rel (0) target = $region21
    $region20: #{loc_scale_forward.1} parent=1 // pred_region
      %41 = dma.done [#allocation5], 1024
    $region21: #{loc_scale_forward.1} parent=1 // pred_fallthru
      _
    %v42 = vld [vmem:[#allocation2] sm:$0xff]
    %v43 = vld [vmem:[#allocation4] sm:$0xff]
    %v44 = vld [vmem:[#allocation4 + $0x8] sm:$0xff]
    %v45 = vld [vmem:[#allocation4 + $0x10] sm:$0xff]
    %v46 = vld [vmem:[#allocation4 + $0x18] sm:$0xff]
    %v47 = vld [vmem:[#allocation4 + $0x20] sm:$0xff]
    %v48 = vld [vmem:[#allocation4 + $0x28] sm:$0xff]
    %v49 = vld [vmem:[#allocation4 + $0x30] sm:$0xff]
    %v50 = vld [vmem:[#allocation4 + $0x38] sm:$0xff]
    %v51 = vld [vmem:[%s2] sm:$0x3]
    %v53 = vlaneseq
    %v54 = vshrl.u32 %v53, 7
    %v55 = vsub.s32 0, %v54
    %v56 = vrot.slane %v51, %v55
    %v57 = vlaneseq
    %v58 = vshrl.u32 %v57, 7
    %v59 = vsub.s32 1, %v58
    %v60 = vrot.slane %v51, %v59
    %vm63 = vcmask 261120
    %v65 = vsel %vm63, %v42, 0
    %67 = vmatprep.subr.mxu0 %v44
    %68 = vmatpush1.msra.mxu0 %v43
    %69 = vmatprep.subr.mxu0 %v46
    %70 = vmatpush1.msra.mxu0 %v45
    %71 = vmatprep.subr.mxu0 %v48
    %72 = vmatpush1.msra.mxu0 %v47
    %73 = vmatprep.subr.mxu0 %v50
    %74 = vmatpush1.msra.mxu0 %v49
    %75 = vmatprep.subr.mxu0 0.0
    %76 = vmatpush1.msra.mxu0 0.0
    %77 = vmatprep.subr.mxu0 0.0
    %78 = vmatpush1.msra.mxu0 0.0
    %79 = vmatprep.subr.mxu0 0.0
    %80 = vmatpush1.msra.mxu0 0.0
    %81 = vmatprep.subr.mxu0 0.0
    %82 = vmatpush1.msra.mxu0 0.0
    %83 = vmatprep.subr.mxu0 0.0
    %84 = vmatpush1.msra.mxu0 0.0
    %85 = vmatprep.subr.mxu0 0.0
    %86 = vmatpush1.msra.mxu0 0.0
    %87 = vmatprep.subr.mxu0 0.0
    %88 = vmatpush1.msra.mxu0 0.0
    %89 = vmatprep.subr.mxu0 0.0
    %90 = vmatpush1.msra.mxu0 0.0
    %91 = vmatprep.subr.mxu0 0.0
    %92 = vmatpush1.msra.mxu0 0.0
    %93 = vmatprep.subr.mxu0 0.0
    %94 = vmatpush1.msra.mxu0 0.0
    %95 = vmatprep.subr.mxu0 0.0
    %96 = vmatpush1.msra.mxu0 0.0
    %97 = vmatprep.subr.mxu0 0.0
    %98 = vmatpush1.msra.mxu0 0.0
    %99 = vmatprep.subr.mxu0 0.0
    %100 = vmatpush1.msra.mxu0 0.0
    %101 = vmatprep.subr.mxu0 0.0
    %102 = vmatpush1.msra.mxu0 0.0
    %103 = vmatprep.subr.mxu0 0.0
    %104 = vmatpush1.msra.mxu0 0.0
    %105 = vmatprep.subr.mxu0 0.0
    %106 = vmatpush1.msra.mxu0 0.0
    %107 = vmatprep.subr.mxu0 0.0
    %108 = vmatpush1.msra.mxu0 0.0
    %109 = vmatprep.subr.mxu0 0.0
    %110 = vmatpush1.msra.mxu0 0.0
    %111 = vmatprep.subr.mxu0 0.0
    %112 = vmatpush1.msra.mxu0 0.0
    %113 = vmatprep.subr.mxu0 0.0
    %114 = vmatpush1.msra.mxu0 0.0
    %115 = vmatprep.subr.mxu0 0.0
    %116 = vmatpush1.msra.mxu0 0.0
    %117 = vmatprep.subr.mxu0 0.0
    %118 = vmatpush1.msra.mxu0 0.0
    %119 = vmatprep.subr.mxu0 0.0
    %120 = vmatpush1.msra.mxu0 0.0
    %121 = vmatprep.subr.mxu0 0.0
    %122 = vmatpush1.msra.mxu0 0.0
    %123 = vmatprep.subr.mxu0 0.0
    %124 = vmatpush1.msra.mxu0 0.0
    %125 = vmatprep.subr.mxu0 0.0
    %126 = vmatpush1.msra.mxu0 0.0
    %127 = vmatprep.subr.mxu0 0.0
    %128 = vmatpush1.msra.mxu0 0.0
    %129 = vmatprep.subr.mxu0 0.0
    %130 = vmatpush1.msra.mxu0 0.0
    %131 = vmatprep.mubr.f32.mxu0 0.0
    %132 = vmatmul.mubr.f32.gmra.mrb[0].mxu0 %v65
    %v133 = vpop.f32.mrb[0].mxu0
    %v134 = vadd.f32 %v56, %v133
    %v135 = vpop.f32.mrb[0].mxu0
    %v136 = vadd.f32 %v60, %v135
    %137 = vdwg.mxu0
    %v138 = vmax.f32 %v136, 0.0
    %v139 = vand.u32 2147483647, %v136
    %v140 = vsub.f32 0.0, %v139
    %v141 = vmul.f32 %v140, 1.442695
    %v142 = vpow.pop %v141
    %v143 = vadd.f32 %v142, 1.0
    %v144 = vlog2.pop %v143
    %v145 = vmul.f32 %v144, 0.6931472
    %v146 = vmul.f32 -0.5, %v142
    %v147 = vadd.f32 %v146, 1.0
    %v148 = vmul.f32 %v147, %v142
    %v149 = vand.u32 2147483647, %v142
    %vm150 = vcmp.lt.f32.partialorder %v149, 0.0004427343
    %v151 = vsel %vm150, %v148, %v145
    %v152 = vadd.f32 %v138, %v151
    %153 = vst [vmem:[%s3] sm:$0xff] %v134
    %154 = vst [vmem:[%s4] sm:$0xff] %v152
    // Predicated region
    $region22: #{loc_scale_forward.1} parent=1 // pred_check
      _
    $region23: #{loc_scale_forward.1} parent=1 // pred_check_branch
      %156 = sbr.rel (0) target = $region25
    $region24: #{loc_scale_forward.1} parent=1 // pred_region
      _
    $region25: #{loc_scale_forward.1} parent=1 // pred_fallthru
      _
    // Predicated region
    $region26: #{loc_scale_forward.1} parent=1 // pred_check
      _
    $region27: #{loc_scale_forward.1} parent=1 // pred_check_branch
      %158 = sbr.rel (0) target = $region29
    $region28: #{loc_scale_forward.1} parent=1 // pred_region
      _
    $region29: #{loc_scale_forward.1} parent=1 // pred_fallthru
      _
    // Predicated region
    $region30: #{loc_scale_forward.1} parent=1 // pred_check
      _
    $region31: #{loc_scale_forward.1} parent=1 // pred_check_branch
      %160 = sbr.rel (0) target = $region33
    $region32: #{loc_scale_forward.1} parent=1 // pred_region
      _
    $region33: #{loc_scale_forward.1} parent=1 // pred_fallthru
      _
    // Predicated region
    $region34: #{loc_scale_forward.1} parent=1 // pred_check
      _
    $region35: #{loc_scale_forward.1} parent=1 // pred_check_branch
      %162 = sbr.rel (0) target = $region37
    $region36: #{loc_scale_forward.1} parent=1 // pred_region
      _
    $region37: #{loc_scale_forward.1} parent=1 // pred_fallthru
      _
    %163 = vsyncpa [#allocation3], 1
    %164 = vsyncpa [#allocation5], 1

</llo_original>
